<compile_context>
chip_gen: v7x
topology: tpu7x:2x2x1
jax: 0.10.0
libtpu: 0.0.40
codegen_flags: <defaults>
</compile_context>

<pallas_src>
import jax
import jax.numpy as jnp
import numpy as np
from jax import lax
from jax.experimental import pallas as pl
from jax.experimental.pallas import tpu as pltpu

# ---- config (mirrors TextCnn.__init__ / config object) ----
VOCAB_SIZE = 50
D_WORD = 32
FILTER_HEIGHTS = (2, 3, 4)
FILTER_NUM = (16, 16, 16)
D_OUTPUT = 8
SEQ_LEN = 8
BATCH = 2
SUM_FILTERS = sum(FILTER_NUM)

MAX_H = max(FILTER_HEIGHTS)     # number of conv taps (4)
V_PAD = 128                     # vocab padded to a full lane tile
C_PAD = 128                     # channel axis padded to a full lane tile
D_OUT_PAD = 128                 # output axis padded to a full lane tile (lane-dense store)
NEG_INF = -1e30


# ----------------- Pallas kernel (single invocation, no grid) -----------------
def textcnn_kernel(toks_ref, g_ref, mask_ref, bconv_ref, wff_ref, bff_ref, out_ref):
    """Fully fused TextCnn forward (embedding + convs + pool + FF).

    toks_ref : (NB_PAD*L, MAX_H) int32   toks[b*L+t, tau] = token id at position t+tau, -1 = pad
    g_ref    : (MAX_H*V_PAD, C_PAD) bf16 fused embedding+conv weight (see pack_params)
    mask_ref : (L, C_PAD)          f32   0 where window row t is valid for branch(c), -1e30 else
    bconv_ref: (1, C_PAD)          f32   concatenated conv biases (padded cols = 0)
    wff_ref  : (C_PAD, D_OUT_PAD)  bf16  final linear weight (zero-padded)
    bff_ref  : (1, D_OUT_PAD)      f32   final linear bias (zero-padded)
    out_ref  : (NB_PAD, D_OUT_PAD) f32
    """
    nbl = toks_ref.shape[0]
    nb_pad = out_ref.shape[0]
    L, c_pad = mask_ref.shape

    # One-hot encode the 4 shifted token streams (exact in bf16: values are 0/1).
    toks = toks_ref[...]                                               # (nbl, MAX_H) i32
    viota = lax.broadcasted_iota(jnp.int32, (nbl, V_PAD), 1)
    oh = jnp.concatenate(
        [(viota == toks[:, tau:tau + 1]).astype(jnp.bfloat16) for tau in range(MAX_H)],
        axis=1)                                                        # (nbl, MAX_H*V_PAD)

    # Embedding lookup + all conv taps of all branches in ONE MXU matmul.
    z = jnp.dot(oh, g_ref[...], preferred_element_type=jnp.float32)   # (nbl, c_pad) f32

    # Masked max-pool over window positions (invalid / partial rows killed by -1e30).
    s = z.reshape(nb_pad, L, c_pad) + mask_ref[...][None, :, :]
    pooled = jnp.max(s, axis=1)                                        # (nb_pad, c_pad)

    # Conv bias folded after the pool: relu(max_t(s)+b) == max_t(relu(s+b)).
    feat = jnp.maximum(pooled + bconv_ref[...], 0.0)                   # f32 (VPU path)

    # dropout: identity at inference time.  Final linear on the MXU.
    out = jnp.dot(feat.astype(jnp.bfloat16), wff_ref[...],
                  preferred_element_type=jnp.float32) + bff_ref[...]
    out_ref[...] = out                                                 # lane-dense (nb_pad, 128)


# ----------------- JAX glue -----------------
def pack_params(params):
    """Pre-pack weights into the fused layouts the kernel consumes (done once)."""
    assert SEQ_LEN >= max(FILTER_HEIGHTS), "every conv branch needs >=1 valid window"
    assert VOCAB_SIZE <= V_PAD

    emb = np.asarray(params["emb"], np.float32)                        # (V, D)

    # Fused embedding+conv weight: G[tau*V_PAD + v, c] = emb[v,:] @ W_h(c)[tau*D:(tau+1)*D, c]
    g = np.zeros((MAX_H * V_PAD, C_PAD), np.float32)
    col = 0
    for h, c, w in zip(FILTER_HEIGHTS, FILTER_NUM, params["conv_w"]):
        w = np.asarray(w, np.float32)                                  # (h*D, c)
        for tau in range(h):
            g[tau * V_PAD: tau * V_PAD + VOCAB_SIZE, col:col + c] = \
                emb @ w[tau * D_WORD:(tau + 1) * D_WORD, :]
        col += c

    # Pool mask over window rows t=0..L-1: row valid for branch h iff t <= L-h.
    mask = np.zeros((SEQ_LEN, C_PAD), np.float32)
    col = 0
    for h, c in zip(FILTER_HEIGHTS, FILTER_NUM):
        T = SEQ_LEN - h + 1
        mask[T:, col:col + c] = NEG_INF
        col += c

    bconv = np.zeros((1, C_PAD), np.float32)
    bconv[:, :SUM_FILTERS] = np.concatenate(
        [np.asarray(b, np.float32) for b in params["conv_b"]], axis=1)

    wff = np.zeros((C_PAD, D_OUT_PAD), np.float32)
    wff[:SUM_FILTERS, :D_OUTPUT] = np.asarray(params["wff"], np.float32)
    bff = np.zeros((1, D_OUT_PAD), np.float32)
    bff[:, :D_OUTPUT] = np.asarray(params["bff"], np.float32)

    return dict(
        g=jnp.asarray(g).astype(jnp.bfloat16),
        mask=jnp.asarray(mask),
        bconv=jnp.asarray(bconv),
        wff=jnp.asarray(wff).astype(jnp.bfloat16),
        bff=jnp.asarray(bff),
    )


def textcnn_pallas(tokens, packed):
    """tokens: (NB, L) int32 -> (NB, D_OUTPUT) f32 logits via one fused kernel."""
    nb = tokens.shape[0]
    nb_pad = max(8, -(-nb // 8) * 8)                                   # full (8,128) output vreg

    # Tiny int32 prep (a few hundred bytes): shifted token streams, -1 = pad.
    tok_full = jnp.full((nb_pad, SEQ_LEN + MAX_H - 1), -1, jnp.int32)
    tok_full = tok_full.at[:nb, :SEQ_LEN].set(tokens.astype(jnp.int32))
    pos = np.arange(SEQ_LEN)[:, None] + np.arange(MAX_H)[None, :]      # (L, MAX_H) static
    toks_shift = tok_full[:, pos].reshape(nb_pad * SEQ_LEN, MAX_H)     # (nb_pad*L, MAX_H)

    vmem = pl.BlockSpec(memory_space=pltpu.MemorySpace.VMEM)
    out = pl.pallas_call(
        textcnn_kernel,
        out_shape=jax.ShapeDtypeStruct((nb_pad, D_OUT_PAD), jnp.float32),
        in_specs=[vmem] * 6,
        out_specs=vmem,
    )(toks_shift, packed["g"], packed["mask"], packed["bconv"],
      packed["wff"], packed["bff"])
    return out[:nb, :D_OUTPUT]


@jax.jit
def siamese_forward(x1, x2, packed):
    """SiameseCnn.forward: shared TextCnn applied to both inputs, one fused kernel call."""
    x = jnp.concatenate([x1, x2], axis=0)                              # (2B, L)
    logits = textcnn_pallas(x, packed)                                 # (2B, D_OUTPUT)
    B = x1.shape[0]
    return logits[:B], logits[B:]


# ----------------- pure-JAX reference (for correctness check) -----------------
def _unfold(emb, h):
    NB, L, D = emb.shape
    T = L - h + 1
    idx = jnp.arange(T)[:, None] + jnp.arange(h)[None, :]
    return emb[:, idx, :].reshape(NB, T, h * D)


def textcnn_ref(tokens, params):
    emb = params["emb"][tokens]
    feats = []
    for h, w, b in zip(FILTER_HEIGHTS, params["conv_w"], params["conv_b"]):
        win = _unfold(emb, h)                                          # (B, T, h*D)
        s = jnp.maximum(jnp.einsum("btd,dc->btc", win, w) + b, 0.0)
        feats.append(jnp.max(s, axis=1))                               # (B, C)
    feat = jnp.concatenate(feats, axis=1)                              # (B, sum C)
    return feat @ params["wff"] + params["bff"]                        # (B, D_OUTPUT)


# ----------------- deterministic parameter init -----------------
def init_params(key):
    ks = jax.random.split(key, 3 + 2 * len(FILTER_HEIGHTS))
    emb = 0.1 * jax.random.normal(ks[0], (VOCAB_SIZE, D_WORD), jnp.float32)
    conv_w, conv_b = [], []
    for i, (c, h) in enumerate(zip(FILTER_NUM, FILTER_HEIGHTS)):
        conv_w.append(0.1 * jax.random.normal(ks[1 + 2 * i], (h * D_WORD, c), jnp.float32))
        conv_b.append(0.1 * jax.random.normal(ks[2 + 2 * i], (1, c), jnp.float32))
    wff = 0.1 * jax.random.normal(ks[-2], (SUM_FILTERS, D_OUTPUT), jnp.float32)
    bff = 0.1 * jax.random.normal(ks[-1], (1, D_OUTPUT), jnp.float32)
    return dict(emb=emb, conv_w=conv_w, conv_b=conv_b, wff=wff, bff=bff)


if __name__ == "__main__":
    key = jax.random.PRNGKey(0)
    kp, kx1, kx2 = jax.random.split(key, 3)
    params = init_params(kp)
    packed = pack_params(params)

    x1 = jax.random.randint(kx1, (BATCH, SEQ_LEN), 0, VOCAB_SIZE, dtype=jnp.int32)
    x2 = jax.random.randint(kx2, (BATCH, SEQ_LEN), 0, VOCAB_SIZE, dtype=jnp.int32)

    logits1, logits2 = siamese_forward(x1, x2, packed)
    jax.block_until_ready((logits1, logits2))

    ref1 = textcnn_ref(x1, params)
    ref2 = textcnn_ref(x2, params)
    # bf16 MXU operands (f32 accumulation) -> tolerance looser than pure f32.
    assert np.allclose(np.asarray(logits1), np.asarray(ref1), atol=2e-2, rtol=2e-2)
    assert np.allclose(np.asarray(logits2), np.asarray(ref2), atol=2e-2, rtol=2e-2)
    assert logits1.shape == (BATCH, D_OUTPUT) and logits2.shape == (BATCH, D_OUTPUT)

    print("KERNEL_OK")
</pallas_src>

<mosaic_0001>
module attributes {stable_mosaic.version = 11 : i64} {
  func.func @textcnn_kernel(%arg0: memref<64x4xi32, #tpu.memory_space<vmem>>, %arg1: memref<512x128xbf16, #tpu.memory_space<vmem>>, %arg2: memref<8x128xf32, #tpu.memory_space<vmem>>, %arg3: memref<1x128xf32, #tpu.memory_space<vmem>>, %arg4: memref<128x128xbf16, #tpu.memory_space<vmem>>, %arg5: memref<1x128xf32, #tpu.memory_space<vmem>>, %arg6: memref<8x128xf32, #tpu.memory_space<vmem>>) attributes {dimension_semantics = [], scalar_prefetch = 0 : i64, scratch_operands = 0 : i64, tpu.core_type = #tpu.core_type<tc>} {
    %c0 = arith.constant 0 : index
    %c0_0 = arith.constant 0 : index
    %0 = vector.load %arg0[%c0, %c0_0] : memref<64x4xi32, #tpu.memory_space<vmem>>, vector<64x4xi32>
    %1 = tpu.iota {dimensions = array<i32: 1>} : vector<64x128xi32>
    %2 = vector.extract_strided_slice %0 {offsets = [0, 0], sizes = [64, 1], strides = [1, 1]} : vector<64x4xi32> to vector<64x1xi32>
    %3 = vector.broadcast %2 : vector<64x1xi32> to vector<64x128xi32>
    %4 = arith.cmpi eq, %1, %3 : vector<64x128xi32>
    %5 = arith.extui %4 : vector<64x128xi1> to vector<64x128xi32>
    %6 = arith.sitofp %5 : vector<64x128xi32> to vector<64x128xf32>
    %7 = arith.truncf %6 : vector<64x128xf32> to vector<64x128xbf16>
    %8 = vector.extract_strided_slice %0 {offsets = [0, 1], sizes = [64, 1], strides = [1, 1]} : vector<64x4xi32> to vector<64x1xi32>
    %9 = vector.broadcast %8 : vector<64x1xi32> to vector<64x128xi32>
    %10 = arith.cmpi eq, %1, %9 : vector<64x128xi32>
    %11 = arith.extui %10 : vector<64x128xi1> to vector<64x128xi32>
    %12 = arith.sitofp %11 : vector<64x128xi32> to vector<64x128xf32>
    %13 = arith.truncf %12 : vector<64x128xf32> to vector<64x128xbf16>
    %14 = vector.extract_strided_slice %0 {offsets = [0, 2], sizes = [64, 1], strides = [1, 1]} : vector<64x4xi32> to vector<64x1xi32>
    %15 = vector.broadcast %14 : vector<64x1xi32> to vector<64x128xi32>
    %16 = arith.cmpi eq, %1, %15 : vector<64x128xi32>
    %17 = arith.extui %16 : vector<64x128xi1> to vector<64x128xi32>
    %18 = arith.sitofp %17 : vector<64x128xi32> to vector<64x128xf32>
    %19 = arith.truncf %18 : vector<64x128xf32> to vector<64x128xbf16>
    %20 = vector.extract_strided_slice %0 {offsets = [0, 3], sizes = [64, 1], strides = [1, 1]} : vector<64x4xi32> to vector<64x1xi32>
    %21 = vector.broadcast %20 : vector<64x1xi32> to vector<64x128xi32>
    %22 = arith.cmpi eq, %1, %21 : vector<64x128xi32>
    %23 = arith.extui %22 : vector<64x128xi1> to vector<64x128xi32>
    %24 = arith.sitofp %23 : vector<64x128xi32> to vector<64x128xf32>
    %25 = arith.truncf %24 : vector<64x128xf32> to vector<64x128xbf16>
    %26 = tpu.concatenate %7, %13, %19, %25 in 1 : vector<64x128xbf16>, vector<64x128xbf16>, vector<64x128xbf16>, vector<64x128xbf16> -> vector<64x512xbf16>
    %c0_1 = arith.constant 0 : index
    %c0_2 = arith.constant 0 : index
    %27 = vector.load %arg1[%c0_1, %c0_2] : memref<512x128xbf16, #tpu.memory_space<vmem>>, vector<512x128xbf16>
    %cst = arith.constant dense<0.000000e+00> : vector<64x128xf32>
    %28 = tpu.matmul %26, %27, %cst {dimension_numbers = #tpu.dot_dimension_numbers<[1], [0], [0], [1], [0, 0, 1, 1], [], []>} : vector<64x512xbf16>, vector<512x128xbf16>, vector<64x128xf32> -> vector<64x128xf32>
    %29 = vector.shape_cast %28 : vector<64x128xf32> to vector<8x8x128xf32>
    %c0_3 = arith.constant 0 : index
    %c0_4 = arith.constant 0 : index
    %30 = vector.load %arg2[%c0_3, %c0_4] : memref<8x128xf32, #tpu.memory_space<vmem>>, vector<8x128xf32>
    %31 = vector.shape_cast %30 : vector<8x128xf32> to vector<1x8x128xf32>
    %32 = vector.broadcast %31 : vector<1x8x128xf32> to vector<8x8x128xf32>
    %33 = arith.addf %29, %32 : vector<8x8x128xf32>
    %cst_5 = arith.constant dense<0xFF800000> : vector<8x128xf32>
    %34 = vector.multi_reduction <maximumf>, %33, %cst_5 [1] : vector<8x8x128xf32> to vector<8x128xf32>
    %c0_6 = arith.constant 0 : index
    %c0_7 = arith.constant 0 : index
    %35 = vector.load %arg3[%c0_6, %c0_7] : memref<1x128xf32, #tpu.memory_space<vmem>>, vector<1x128xf32>
    %36 = vector.broadcast %35 : vector<1x128xf32> to vector<8x128xf32>
    %37 = arith.addf %34, %36 : vector<8x128xf32>
    %cst_8 = arith.constant 0.000000e+00 : f32
    %38 = vector.broadcast %cst_8 : f32 to vector<8x128xf32>
    %39 = arith.maximumf %37, %38 : vector<8x128xf32>
    %40 = arith.truncf %39 : vector<8x128xf32> to vector<8x128xbf16>
    %c0_9 = arith.constant 0 : index
    %c0_10 = arith.constant 0 : index
    %41 = vector.load %arg4[%c0_9, %c0_10] : memref<128x128xbf16, #tpu.memory_space<vmem>>, vector<128x128xbf16>
    %cst_11 = arith.constant dense<0.000000e+00> : vector<8x128xf32>
    %42 = tpu.matmul %40, %41, %cst_11 {dimension_numbers = #tpu.dot_dimension_numbers<[1], [0], [0], [1], [0, 0, 1, 1], [], []>} : vector<8x128xbf16>, vector<128x128xbf16>, vector<8x128xf32> -> vector<8x128xf32>
    %c0_12 = arith.constant 0 : index
    %c0_13 = arith.constant 0 : index
    %43 = vector.load %arg5[%c0_12, %c0_13] : memref<1x128xf32, #tpu.memory_space<vmem>>, vector<1x128xf32>
    %44 = vector.broadcast %43 : vector<1x128xf32> to vector<8x128xf32>
    %45 = arith.addf %42, %44 : vector<8x128xf32>
    %c0_14 = arith.constant 0 : index
    %c0_15 = arith.constant 0 : index
    %46 = vector.load %arg6[%c0_14, %c0_15] : memref<8x128xf32, #tpu.memory_space<vmem>>, vector<8x128xf32>
    tpu.vector_store %arg6[%c0_14, %c0_15], %45 {strides = array<i32>} : memref<8x128xf32, #tpu.memory_space<vmem>>, vector<8x128xf32>,
    return
  }
}

</mosaic_0001>

<llo_original>
// kernel: siamese_forward.1
$region0: #{siamese_forward.1}
  #allocation0 [shape = 'u32[]', space=smem, size = 0x4, offset = 0x4, fixed_abs, tag = 'smem constant byte address 0x4 - core index']
  #allocation1 [shape = 'u32[144,128]{1,0:T(1,128)}', space=vmem, size = 0x12000, scoped, tag = 'internal scratch']
  %s0 = inlined_call_operand.vmem [shape: s32[64,4], index: 0, kind: input, shape index: {}]
  %s1 = inlined_call_operand.vmem [shape: bf16[512,128], index: 1, kind: input, shape index: {}]
  %s2 = inlined_call_operand.vmem [shape: f32[8,128], index: 2, kind: input, shape index: {}]
  %s3 = inlined_call_operand.vmem [shape: f32[1,128], index: 3, kind: input, shape index: {}]
  %s4 = inlined_call_operand.vmem [shape: bf16[128,128], index: 4, kind: input, shape index: {}]
  %s5 = inlined_call_operand.vmem [shape: f32[1,128], index: 5, kind: input, shape index: {}]
  %s6 = inlined_call_operand.vmem [shape: f32[8,128], index: 6, kind: output, shape index: {}]
  %s7 = sld [smem:[#allocation0]]
  $region34: #{siamese_forward.1} parent=0
    _
  %s9 = ssub.s32 1, %s7
  %s10 = scalar_select 0, %s9, %s7
  // Predicated region
  $region2: #{siamese_forward.1} parent=0 // pred_check
    _
  $region3: #{siamese_forward.1} parent=0 // pred_check_branch
    %12 = sbr.rel (0) target = $region5
  $region4: #{siamese_forward.1} parent=0 // pred_region
    _
  $region5: #{siamese_forward.1} parent=0 // pred_fallthru
    _
  // Predicated region
  $region6: #{siamese_forward.1} parent=0 // pred_check
    _
  $region7: #{siamese_forward.1} parent=0 // pred_check_branch
    %14 = sbr.rel (0) target = $region9
  $region8: #{siamese_forward.1} parent=0 // pred_region
    _
  $region9: #{siamese_forward.1} parent=0 // pred_fallthru
    _
  // Predicated region
  $region10: #{siamese_forward.1} parent=0 // pred_check
    _
  $region11: #{siamese_forward.1} parent=0 // pred_check_branch
    %16 = sbr.rel (0) target = $region13
  $region12: #{siamese_forward.1} parent=0 // pred_region
    _
  $region13: #{siamese_forward.1} parent=0 // pred_fallthru
    _
  // Predicated region
  $region14: #{siamese_forward.1} parent=0 // pred_check
    _
  $region15: #{siamese_forward.1} parent=0 // pred_check_branch
    %18 = sbr.rel (0) target = $region17
  $region16: #{siamese_forward.1} parent=0 // pred_region
    _
  $region17: #{siamese_forward.1} parent=0 // pred_fallthru
    _
  // Predicated region
  $region18: #{siamese_forward.1} parent=0 // pred_check
    _
  $region19: #{siamese_forward.1} parent=0 // pred_check_branch
    %20 = sbr.rel (0) target = $region21
  $region20: #{siamese_forward.1} parent=0 // pred_region
    _
  $region21: #{siamese_forward.1} parent=0 // pred_fallthru
    _
  // Predicated region
  $region22: #{siamese_forward.1} parent=0 // pred_check
    _
  $region23: #{siamese_forward.1} parent=0 // pred_check_branch
    %22 = sbr.rel (0) target = $region25
  $region24: #{siamese_forward.1} parent=0 // pred_region
    _
  $region25: #{siamese_forward.1} parent=0 // pred_fallthru
    _
  %v24 = vld [vmem:[%s0] sm:$0xff]
  %v25 = vld [vmem:[%s0 + $0x8] sm:$0xff]
  %v26 = vld [vmem:[%s0 + $0x10] sm:$0xff]
  %v27 = vld [vmem:[%s0 + $0x18] sm:$0xff]
  %v28 = vld [vmem:[%s0 + $0x20] sm:$0xff]
  %v29 = vld [vmem:[%s0 + $0x28] sm:$0xff]
  %v30 = vld [vmem:[%s0 + $0x30] sm:$0xff]
  %v31 = vld [vmem:[%s0 + $0x38] sm:$0xff]
  %v32 = vlaneseq
  %v33 = vand.u32 %v32, 127
  %34 = vset.pattern.permute.xlu0 0
  %35 = vperm.xlu0 %34, %v24
  %v36 = vpop.permute.xlu0 %35
  %37 = vset.pattern.permute.xlu0 0
  %38 = vperm.xlu0 %37, %v25
  %v39 = vpop.permute.xlu0 %38
  %40 = vset.pattern.permute.xlu0 0
  %41 = vperm.xlu0 %40, %v26
  %v42 = vpop.permute.xlu0 %41
  %43 = vset.pattern.permute.xlu0 0
  %44 = vperm.xlu0 %43, %v27
  %v45 = vpop.permute.xlu0 %44
  %46 = vset.pattern.permute.xlu0 0
  %47 = vperm.xlu0 %46, %v28
  %v48 = vpop.permute.xlu0 %47
  %49 = vset.pattern.permute.xlu0 0
  %50 = vperm.xlu0 %49, %v29
  %v51 = vpop.permute.xlu0 %50
  %52 = vset.pattern.permute.xlu0 0
  %53 = vperm.xlu0 %52, %v30
  %v54 = vpop.permute.xlu0 %53
  %55 = vset.pattern.permute.xlu0 0
  %56 = vperm.xlu0 %55, %v31
  %v57 = vpop.permute.xlu0 %56
  %vm58 = vcmp.eq.s32.totalorder %v33, %v36
  %vm59 = vcmp.eq.s32.totalorder %v33, %v39
  %vm60 = vcmp.eq.s32.totalorder %v33, %v42
  %vm61 = vcmp.eq.s32.totalorder %v33, %v45
  %vm62 = vcmp.eq.s32.totalorder %v33, %v48
  %vm63 = vcmp.eq.s32.totalorder %v33, %v51
  %vm64 = vcmp.eq.s32.totalorder %v33, %v54
  %vm65 = vcmp.eq.s32.totalorder %v33, %v57
  %v66 = vsel %vm58, 1, 0
  %v67 = vsel %vm59, 1, 0
  %v68 = vsel %vm60, 1, 0
  %v69 = vsel %vm61, 1, 0
  %v70 = vsel %vm62, 1, 0
  %v71 = vsel %vm63, 1, 0
  %v72 = vsel %vm64, 1, 0
  %v73 = vsel %vm65, 1, 0
  %v74 = vcvt.s32.f32 %v66
  %v75 = vcvt.s32.f32 %v67
  %v76 = vcvt.s32.f32 %v68
  %v77 = vcvt.s32.f32 %v69
  %v78 = vcvt.s32.f32 %v70
  %v79 = vcvt.s32.f32 %v71
  %v80 = vcvt.s32.f32 %v72
  %v81 = vcvt.s32.f32 %v73
  %v82 = vpack.c.bf16 %v75, %v74
  %v83 = vpack.c.bf16 %v77, %v76
  %v84 = vpack.c.bf16 %v79, %v78
  %v85 = vpack.c.bf16 %v81, %v80
  %86 = vset.pattern.permute.xlu0 1
  %87 = vperm.xlu0 %86, %v24
  %v88 = vpop.permute.xlu0 %87
  %89 = vset.pattern.permute.xlu0 1
  %90 = vperm.xlu0 %89, %v25
  %v91 = vpop.permute.xlu0 %90
  %92 = vset.pattern.permute.xlu0 1
  %93 = vperm.xlu0 %92, %v26
  %v94 = vpop.permute.xlu0 %93
  %95 = vset.pattern.permute.xlu0 1
  %96 = vperm.xlu0 %95, %v27
  %v97 = vpop.permute.xlu0 %96
  %98 = vset.pattern.permute.xlu0 1
  %99 = vperm.xlu0 %98, %v28
  %v100 = vpop.permute.xlu0 %99
  %101 = vset.pattern.permute.xlu0 1
  %102 = vperm.xlu0 %101, %v29
  %v103 = vpop.permute.xlu0 %102
  %104 = vset.pattern.permute.xlu0 1
  %105 = vperm.xlu0 %104, %v30
  %v106 = vpop.permute.xlu0 %105
  %107 = vset.pattern.permute.xlu0 1
  %108 = vperm.xlu0 %107, %v31
  %v109 = vpop.permute.xlu0 %108
  %vm110 = vcmp.eq.s32.totalorder %v33, %v88
  %vm111 = vcmp.eq.s32.totalorder %v33, %v91
  %vm112 = vcmp.eq.s32.totalorder %v33, %v94
  %vm113 = vcmp.eq.s32.totalorder %v33, %v97
  %vm114 = vcmp.eq.s32.totalorder %v33, %v100
  %vm115 = vcmp.eq.s32.totalorder %v33, %v103
  %vm116 = vcmp.eq.s32.totalorder %v33, %v106
  %vm117 = vcmp.eq.s32.totalorder %v33, %v109
  %v118 = vsel %vm110, 1, 0
  %v119 = vsel %vm111, 1, 0
  %v120 = vsel %vm112, 1, 0
  %v121 = vsel %vm113, 1, 0
  %v122 = vsel %vm114, 1, 0
  %v123 = vsel %vm115, 1, 0
  %v124 = vsel %vm116, 1, 0
  %v125 = vsel %vm117, 1, 0
  %v126 = vcvt.s32.f32 %v118
  %v127 = vcvt.s32.f32 %v119
  %v128 = vcvt.s32.f32 %v120
  %v129 = vcvt.s32.f32 %v121
  %v130 = vcvt.s32.f32 %v122
  %v131 = vcvt.s32.f32 %v123
  %v132 = vcvt.s32.f32 %v124
  %v133 = vcvt.s32.f32 %v125
  %v134 = vpack.c.bf16 %v127, %v126
  %v135 = vpack.c.bf16 %v129, %v128
  %v136 = vpack.c.bf16 %v131, %v130
  %v137 = vpack.c.bf16 %v133, %v132
  %138 = vset.pattern.permute.xlu0 2
  %139 = vperm.xlu0 %138, %v24
  %v140 = vpop.permute.xlu0 %139
  %141 = vset.pattern.permute.xlu0 2
  %142 = vperm.xlu0 %141, %v25
  %v143 = vpop.permute.xlu0 %142
  %144 = vset.pattern.permute.xlu0 2
  %145 = vperm.xlu0 %144, %v26
  %v146 = vpop.permute.xlu0 %145
  %147 = vset.pattern.permute.xlu0 2
  %148 = vperm.xlu0 %147, %v27
  %v149 = vpop.permute.xlu0 %148
  %150 = vset.pattern.permute.xlu0 2
  %151 = vperm.xlu0 %150, %v28
  %v152 = vpop.permute.xlu0 %151
  %153 = vset.pattern.permute.xlu0 2
  %154 = vperm.xlu0 %153, %v29
  %v155 = vpop.permute.xlu0 %154
  %156 = vset.pattern.permute.xlu0 2
  %157 = vperm.xlu0 %156, %v30
  %v158 = vpop.permute.xlu0 %157
  %159 = vset.pattern.permute.xlu0 2
  %160 = vperm.xlu0 %159, %v31
  %v161 = vpop.permute.xlu0 %160
  %vm162 = vcmp.eq.s32.totalorder %v33, %v140
  %vm163 = vcmp.eq.s32.totalorder %v33, %v143
  %vm164 = vcmp.eq.s32.totalorder %v33, %v146
  %vm165 = vcmp.eq.s32.totalorder %v33, %v149
  %vm166 = vcmp.eq.s32.totalorder %v33, %v152
  %vm167 = vcmp.eq.s32.totalorder %v33, %v155
  %vm168 = vcmp.eq.s32.totalorder %v33, %v158
  %vm169 = vcmp.eq.s32.totalorder %v33, %v161
  %v170 = vsel %vm162, 1, 0
  %v171 = vsel %vm163, 1, 0
  %v172 = vsel %vm164, 1, 0
  %v173 = vsel %vm165, 1, 0
  %v174 = vsel %vm166, 1, 0
  %v175 = vsel %vm167, 1, 0
  %v176 = vsel %vm168, 1, 0
  %v177 = vsel %vm169, 1, 0
  %v178 = vcvt.s32.f32 %v170
  %v179 = vcvt.s32.f32 %v171
  %v180 = vcvt.s32.f32 %v172
  %v181 = vcvt.s32.f32 %v173
  %v182 = vcvt.s32.f32 %v174
  %v183 = vcvt.s32.f32 %v175
  %v184 = vcvt.s32.f32 %v176
  %v185 = vcvt.s32.f32 %v177
  %v186 = vpack.c.bf16 %v179, %v178
  %v187 = vpack.c.bf16 %v181, %v180
  %v188 = vpack.c.bf16 %v183, %v182
  %v189 = vpack.c.bf16 %v185, %v184
  %190 = vset.pattern.permute.xlu0 3
  %191 = vperm.xlu0 %190, %v24
  %v192 = vpop.permute.xlu0 %191
  %193 = vset.pattern.permute.xlu0 3
  %194 = vperm.xlu0 %193, %v25
  %v195 = vpop.permute.xlu0 %194
  %196 = vset.pattern.permute.xlu0 3
  %197 = vperm.xlu0 %196, %v26
  %v198 = vpop.permute.xlu0 %197
  %199 = vset.pattern.permute.xlu0 3
  %200 = vperm.xlu0 %199, %v27
  %v201 = vpop.permute.xlu0 %200
  %202 = vset.pattern.permute.xlu0 3
  %203 = vperm.xlu0 %202, %v28
  %v204 = vpop.permute.xlu0 %203
  %205 = vset.pattern.permute.xlu0 3
  %206 = vperm.xlu0 %205, %v29
  %v207 = vpop.permute.xlu0 %206
  %208 = vset.pattern.permute.xlu0 3
  %209 = vperm.xlu0 %208, %v30
  %v210 = vpop.permute.xlu0 %209
  %211 = vset.pattern.permute.xlu0 3
  %212 = vperm.xlu0 %211, %v31
  %v213 = vpop.permute.xlu0 %212
  %vm214 = vcmp.eq.s32.totalorder %v33, %v192
  %vm215 = vcmp.eq.s32.totalorder %v33, %v195
  %vm216 = vcmp.eq.s32.totalorder %v33, %v198
  %vm217 = vcmp.eq.s32.totalorder %v33, %v201
  %vm218 = vcmp.eq.s32.totalorder %v33, %v204
  %vm219 = vcmp.eq.s32.totalorder %v33, %v207
  %vm220 = vcmp.eq.s32.totalorder %v33, %v210
  %vm221 = vcmp.eq.s32.totalorder %v33, %v213
  %v222 = vsel %vm214, 1, 0
  %v223 = vsel %vm215, 1, 0
  %v224 = vsel %vm216, 1, 0
  %v225 = vsel %vm217, 1, 0
  %v226 = vsel %vm218, 1, 0
  %v227 = vsel %vm219, 1, 0
  %v228 = vsel %vm220, 1, 0
  %v229 = vsel %vm221, 1, 0
  %v230 = vcvt.s32.f32 %v222
  %v231 = vcvt.s32.f32 %v223
  %v232 = vcvt.s32.f32 %v224
  %v233 = vcvt.s32.f32 %v225
  %v234 = vcvt.s32.f32 %v226
  %v235 = vcvt.s32.f32 %v227
  %v236 = vcvt.s32.f32 %v228
  %v237 = vcvt.s32.f32 %v229
  %v238 = vpack.c.bf16 %v231, %v230
  %v239 = vpack.c.bf16 %v233, %v232
  %v240 = vpack.c.bf16 %v235, %v234
  %v241 = vpack.c.bf16 %v237, %v236
  %v242 = vld [vmem:[%s1] sm:$0xf]
  %v243 = vld [vmem:[%s1 + $0x4] sm:$0xf]
  %v244 = vld [vmem:[%s1 + $0x8] sm:$0xf]
  %v245 = vld [vmem:[%s1 + $0xc] sm:$0xf]
  %v246 = vld [vmem:[%s1 + $0x10] sm:$0xf]
  %v247 = vld [vmem:[%s1 + $0x14] sm:$0xf]
  %v248 = vld [vmem:[%s1 + $0x18] sm:$0xf]
  %v249 = vld [vmem:[%s1 + $0x1c] sm:$0xf]
  %v250 = vld [vmem:[%s1 + $0x20] sm:$0xf]
  %v251 = vld [vmem:[%s1 + $0x24] sm:$0xf]
  %v252 = vld [vmem:[%s1 + $0x28] sm:$0xf]
  %v253 = vld [vmem:[%s1 + $0x2c] sm:$0xf]
  %v254 = vld [vmem:[%s1 + $0x30] sm:$0xf]
  %v255 = vld [vmem:[%s1 + $0x34] sm:$0xf]
  %v256 = vld [vmem:[%s1 + $0x38] sm:$0xf]
  %v257 = vld [vmem:[%s1 + $0x3c] sm:$0xf]
  %v258 = vld [vmem:[%s1 + $0x40] sm:$0xf]
  %v259 = vld [vmem:[%s1 + $0x44] sm:$0xf]
  %v260 = vld [vmem:[%s1 + $0x48] sm:$0xf]
  %v261 = vld [vmem:[%s1 + $0x4c] sm:$0xf]
  %v262 = vld [vmem:[%s1 + $0x50] sm:$0xf]
  %v263 = vld [vmem:[%s1 + $0x54] sm:$0xf]
  %v264 = vld [vmem:[%s1 + $0x58] sm:$0xf]
  %v265 = vld [vmem:[%s1 + $0x5c] sm:$0xf]
  %v266 = vld [vmem:[%s1 + $0x60] sm:$0xf]
  %v267 = vld [vmem:[%s1 + $0x64] sm:$0xf]
  %v268 = vld [vmem:[%s1 + $0x68] sm:$0xf]
  %v269 = vld [vmem:[%s1 + $0x6c] sm:$0xf]
  %v270 = vld [vmem:[%s1 + $0x70] sm:$0xf]
  %v271 = vld [vmem:[%s1 + $0x74] sm:$0xf]
  %v272 = vld [vmem:[%s1 + $0x78] sm:$0xf]
  %v273 = vld [vmem:[%s1 + $0x7c] sm:$0xf]
  %v274 = vld [vmem:[%s1 + $0x80] sm:$0xf]
  %v275 = vld [vmem:[%s1 + $0x84] sm:$0xf]
  %v276 = vld [vmem:[%s1 + $0x88] sm:$0xf]
  %v277 = vld [vmem:[%s1 + $0x8c] sm:$0xf]
  %v278 = vld [vmem:[%s1 + $0x90] sm:$0xf]
  %v279 = vld [vmem:[%s1 + $0x94] sm:$0xf]
  %v280 = vld [vmem:[%s1 + $0x98] sm:$0xf]
  %v281 = vld [vmem:[%s1 + $0x9c] sm:$0xf]
  %v282 = vld [vmem:[%s1 + $0xa0] sm:$0xf]
  %v283 = vld [vmem:[%s1 + $0xa4] sm:$0xf]
  %v284 = vld [vmem:[%s1 + $0xa8] sm:$0xf]
  %v285 = vld [vmem:[%s1 + $0xac] sm:$0xf]
  %v286 = vld [vmem:[%s1 + $0xb0] sm:$0xf]
  %v287 = vld [vmem:[%s1 + $0xb4] sm:$0xf]
  %v288 = vld [vmem:[%s1 + $0xb8] sm:$0xf]
  %v289 = vld [vmem:[%s1 + $0xbc] sm:$0xf]
  %v290 = vld [vmem:[%s1 + $0xc0] sm:$0xf]
  %v291 = vld [vmem:[%s1 + $0xc4] sm:$0xf]
  %v292 = vld [vmem:[%s1 + $0xc8] sm:$0xf]
  %v293 = vld [vmem:[%s1 + $0xcc] sm:$0xf]
  %v294 = vld [vmem:[%s1 + $0xd0] sm:$0xf]
  %v295 = vld [vmem:[%s1 + $0xd4] sm:$0xf]
  %v296 = vld [vmem:[%s1 + $0xd8] sm:$0xf]
  %v297 = vld [vmem:[%s1 + $0xdc] sm:$0xf]
  %v298 = vld [vmem:[%s1 + $0xe0] sm:$0xf]
  %v299 = vld [vmem:[%s1 + $0xe4] sm:$0xf]
  %v300 = vld [vmem:[%s1 + $0xe8] sm:$0xf]
  %v301 = vld [vmem:[%s1 + $0xec] sm:$0xf]
  %v302 = vld [vmem:[%s1 + $0xf0] sm:$0xf]
  %v303 = vld [vmem:[%s1 + $0xf4] sm:$0xf]
  %v304 = vld [vmem:[%s1 + $0xf8] sm:$0xf]
  %v305 = vld [vmem:[%s1 + $0xfc] sm:$0xf]
  %v370 = vunpack.c.l.b16 %v242
  %v371 = vunpack.c.l.b16 %v243
  %v372 = vunpack.c.l.b16 %v244
  %v373 = vunpack.c.l.b16 %v245
  %v374 = vunpack.c.l.b16 %v246
  %v375 = vunpack.c.l.b16 %v247
  %v376 = vunpack.c.l.b16 %v248
  %v377 = vunpack.c.l.b16 %v249
  %v378 = vunpack.c.l.b16 %v250
  %v379 = vunpack.c.l.b16 %v251
  %v380 = vunpack.c.l.b16 %v252
  %v381 = vunpack.c.l.b16 %v253
  %v382 = vunpack.c.l.b16 %v254
  %v383 = vunpack.c.l.b16 %v255
  %v384 = vunpack.c.l.b16 %v256
  %v385 = vunpack.c.l.b16 %v257
  %v386 = vunpack.c.l.b16 %v258
  %v387 = vunpack.c.l.b16 %v259
  %v388 = vunpack.c.l.b16 %v260
  %v389 = vunpack.c.l.b16 %v261
  %v390 = vunpack.c.l.b16 %v262
  %v391 = vunpack.c.l.b16 %v263
  %v392 = vunpack.c.l.b16 %v264
  %v393 = vunpack.c.l.b16 %v265
  %v394 = vunpack.c.l.b16 %v266
  %v395 = vunpack.c.l.b16 %v267
  %v396 = vunpack.c.l.b16 %v268
  %v397 = vunpack.c.l.b16 %v269
  %v398 = vunpack.c.l.b16 %v270
  %v399 = vunpack.c.l.b16 %v271
  %v400 = vunpack.c.l.b16 %v272
  %v401 = vunpack.c.l.b16 %v273
  %v402 = vunpack.c.l.b16 %v274
  %v403 = vunpack.c.l.b16 %v275
  %v404 = vunpack.c.l.b16 %v276
  %v405 = vunpack.c.l.b16 %v277
  %v406 = vunpack.c.l.b16 %v278
  %v407 = vunpack.c.l.b16 %v279
  %v408 = vunpack.c.l.b16 %v280
  %v409 = vunpack.c.l.b16 %v281
  %v410 = vunpack.c.l.b16 %v282
  %v411 = vunpack.c.l.b16 %v283
  %v412 = vunpack.c.l.b16 %v284
  %v413 = vunpack.c.l.b16 %v285
  %v414 = vunpack.c.l.b16 %v286
  %v415 = vunpack.c.l.b16 %v287
  %v416 = vunpack.c.l.b16 %v288
  %v417 = vunpack.c.l.b16 %v289
  %v418 = vunpack.c.l.b16 %v290
  %v419 = vunpack.c.l.b16 %v291
  %v420 = vunpack.c.l.b16 %v292
  %v421 = vunpack.c.l.b16 %v293
  %v422 = vunpack.c.l.b16 %v294
  %v423 = vunpack.c.l.b16 %v295
  %v424 = vunpack.c.l.b16 %v296
  %v425 = vunpack.c.l.b16 %v297
  %v426 = vunpack.c.l.b16 %v298
  %v427 = vunpack.c.l.b16 %v299
  %v428 = vunpack.c.l.b16 %v300
  %v429 = vunpack.c.l.b16 %v301
  %v430 = vunpack.c.l.b16 %v302
  %v431 = vunpack.c.l.b16 %v303
  %v432 = vunpack.c.l.b16 %v304
  %v433 = vunpack.c.l.b16 %v305
  %v434 = vpack.c.b16 %v371, %v370
  %v435 = vpack.c.b16 %v373, %v372
  %v436 = vpack.c.b16 %v375, %v374
  %v437 = vpack.c.b16 %v377, %v376
  %v438 = vpack.c.b16 %v379, %v378
  %v439 = vpack.c.b16 %v381, %v380
  %v440 = vpack.c.b16 %v383, %v382
  %v441 = vpack.c.b16 %v385, %v384
  %v442 = vpack.c.b16 %v387, %v386
  %v443 = vpack.c.b16 %v389, %v388
  %v444 = vpack.c.b16 %v391, %v390
  %v445 = vpack.c.b16 %v393, %v392
  %v446 = vpack.c.b16 %v395, %v394
  %v447 = vpack.c.b16 %v397, %v396
  %v448 = vpack.c.b16 %v399, %v398
  %v449 = vpack.c.b16 %v401, %v400
  %v450 = vpack.c.b16 %v403, %v402
  %v451 = vpack.c.b16 %v405, %v404
  %v452 = vpack.c.b16 %v407, %v406
  %v453 = vpack.c.b16 %v409, %v408
  %v454 = vpack.c.b16 %v411, %v410
  %v455 = vpack.c.b16 %v413, %v412
  %v456 = vpack.c.b16 %v415, %v414
  %v457 = vpack.c.b16 %v417, %v416
  %v458 = vpack.c.b16 %v419, %v418
  %v459 = vpack.c.b16 %v421, %v420
  %v460 = vpack.c.b16 %v423, %v422
  %v461 = vpack.c.b16 %v425, %v424
  %v462 = vpack.c.b16 %v427, %v426
  %v463 = vpack.c.b16 %v429, %v428
  %v464 = vpack.c.b16 %v431, %v430
  %v465 = vpack.c.b16 %v433, %v432
  %498 = vmatprep.subr.bf16.mxu0 0
  %499 = vmatpush1.bf16.msra.mxu0 %v434
  %500 = vmatprep.subr.bf16.mxu0 0
  %501 = vmatpush1.bf16.msra.mxu0 %v435
  %502 = vmatprep.subr.bf16.mxu0 0
  %503 = vmatpush1.bf16.msra.mxu0 %v436
  %504 = vmatprep.subr.bf16.mxu0 0
  %505 = vmatpush1.bf16.msra.mxu0 %v437
  %506 = vmatprep.subr.bf16.mxu0 0
  %507 = vmatpush1.bf16.msra.mxu0 %v438
  %508 = vmatprep.subr.bf16.mxu0 0
  %509 = vmatpush1.bf16.msra.mxu0 %v439
  %510 = vmatprep.subr.bf16.mxu0 0
  %511 = vmatpush1.bf16.msra.mxu0 %v440
  %512 = vmatprep.subr.bf16.mxu0 0
  %513 = vmatpush1.bf16.msra.mxu0 %v441
  %514 = vmatprep.subr.bf16.mxu0 0
  %515 = vmatpush1.bf16.msra.mxu0 %v442
  %516 = vmatprep.subr.bf16.mxu0 0
  %517 = vmatpush1.bf16.msra.mxu0 %v443
  %518 = vmatprep.subr.bf16.mxu0 0
  %519 = vmatpush1.bf16.msra.mxu0 %v444
  %520 = vmatprep.subr.bf16.mxu0 0
  %521 = vmatpush1.bf16.msra.mxu0 %v445
  %522 = vmatprep.subr.bf16.mxu0 0
  %523 = vmatpush1.bf16.msra.mxu0 %v446
  %524 = vmatprep.subr.bf16.mxu0 0
  %525 = vmatpush1.bf16.msra.mxu0 %v447
  %526 = vmatprep.subr.bf16.mxu0 0
  %527 = vmatpush1.bf16.msra.mxu0 %v448
  %528 = vmatprep.subr.bf16.mxu0 0
  %529 = vmatpush1.bf16.msra.mxu0 %v449
  %530 = vmatprep.mubr.bf16.mxu0 %v134
  %531 = vmatmul.mubr.bf16.gmra.mrb[0].mxu0 %v82
  %v532 = vpop.f32.mrb[0].mxu0
  %v533 = vadd.f32 0.0, %v532
  %v534 = vpop.f32.mrb[0].mxu0
  %v535 = vpop.f32.mrb[0].mxu0
  %v536 = vadd.f32 0.0, %v535
  %v537 = vpop.f32.mrb[0].mxu0
  %538 = vmatprep.mubr.bf16.mxu0 %v135
  %539 = vmatmul.mubr.bf16.gmra.mrb[0].mxu0 %v83
  %v540 = vpop.f32.mrb[0].mxu0
  %v541 = vadd.f32 0.0, %v540
  %v542 = vpop.f32.mrb[0].mxu0
  %v543 = vpop.f32.mrb[0].mxu0
  %v544 = vadd.f32 0.0, %v543
  %v545 = vpop.f32.mrb[0].mxu0
  %546 = vmatprep.mubr.bf16.mxu0 %v136
  %547 = vmatmul.mubr.bf16.gmra.mrb[0].mxu0 %v84
  %v548 = vpop.f32.mrb[0].mxu0
  %v549 = vadd.f32 0.0, %v548
  %v550 = vpop.f32.mrb[0].mxu0
  %v551 = vpop.f32.mrb[0].mxu0
  %v552 = vadd.f32 0.0, %v551
  %v553 = vpop.f32.mrb[0].mxu0
  %554 = vmatprep.mubr.bf16.mxu0 %v137
  %555 = vmatmul.mubr.bf16.gmra.mrb[0].mxu0 %v85
  %v556 = vpop.f32.mrb[0].mxu0
  %v557 = vadd.f32 0.0, %v556
  %v558 = vpop.f32.mrb[0].mxu0
  %v559 = vpop.f32.mrb[0].mxu0
  %v560 = vadd.f32 0.0, %v559
  %v561 = vpop.f32.mrb[0].mxu0
  %562 = vdwg.mxu0
  %563 = vmatprep.subr.bf16.mxu0 0
  %564 = vmatpush1.bf16.msra.mxu0 %v450
  %565 = vmatprep.subr.bf16.mxu0 0
  %566 = vmatpush1.bf16.msra.mxu0 %v451
  %567 = vmatprep.subr.bf16.mxu0 0
  %568 = vmatpush1.bf16.msra.mxu0 %v452
  %569 = vmatprep.subr.bf16.mxu0 0
  %570 = vmatpush1.bf16.msra.mxu0 %v453
  %571 = vmatprep.subr.bf16.mxu0 0
  %572 = vmatpush1.bf16.msra.mxu0 %v454
  %573 = vmatprep.subr.bf16.mxu0 0
  %574 = vmatpush1.bf16.msra.mxu0 %v455
  %575 = vmatprep.subr.bf16.mxu0 0
  %576 = vmatpush1.bf16.msra.mxu0 %v456
  %577 = vmatprep.subr.bf16.mxu0 0
  %578 = vmatpush1.bf16.msra.mxu0 %v457
  %579 = vmatprep.subr.bf16.mxu0 0
  %580 = vmatpush1.bf16.msra.mxu0 %v458
  %581 = vmatprep.subr.bf16.mxu0 0
  %582 = vmatpush1.bf16.msra.mxu0 %v459
  %583 = vmatprep.subr.bf16.mxu0 0
  %584 = vmatpush1.bf16.msra.mxu0 %v460
  %585 = vmatprep.subr.bf16.mxu0 0
  %586 = vmatpush1.bf16.msra.mxu0 %v461
  %587 = vmatprep.subr.bf16.mxu0 0
  %588 = vmatpush1.bf16.msra.mxu0 %v462
  %589 = vmatprep.subr.bf16.mxu0 0
  %590 = vmatpush1.bf16.msra.mxu0 %v463
  %591 = vmatprep.subr.bf16.mxu0 0
  %592 = vmatpush1.bf16.msra.mxu0 %v464
  %593 = vmatprep.subr.bf16.mxu0 0
  %594 = vmatpush1.bf16.msra.mxu0 %v465
  %595 = vmatprep.mubr.bf16.mxu0 %v238
  %596 = vmatmul.mubr.bf16.gmra.mrb[0].mxu0 %v186
  %v597 = vpop.f32.mrb[0].mxu0
  %v598 = vadd.f32 %v533, %v597
  %v599 = vpop.f32.mrb[0].mxu0
  %v600 = vpop.f32.mrb[0].mxu0
  %v601 = vadd.f32 %v536, %v600
  %v602 = vpop.f32.mrb[0].mxu0
  %603 = vmatprep.mubr.bf16.mxu0 %v239
  %604 = vmatmul.mubr.bf16.gmra.mrb[0].mxu0 %v187
  %v605 = vpop.f32.mrb[0].mxu0
  %v606 = vadd.f32 %v541, %v605
  %v607 = vpop.f32.mrb[0].mxu0
  %v608 = vpop.f32.mrb[0].mxu0
  %v609 = vadd.f32 %v544, %v608
  %v610 = vpop.f32.mrb[0].mxu0
  %611 = vmatprep.mubr.bf16.mxu0 %v240
  %612 = vmatmul.mubr.bf16.gmra.mrb[0].mxu0 %v188
  %v613 = vpop.f32.mrb[0].mxu0
  %v614 = vadd.f32 %v549, %v613
  %v615 = vpop.f32.mrb[0].mxu0
  %v616 = vpop.f32.mrb[0].mxu0
  %v617 = vadd.f32 %v552, %v616
  %v618 = vpop.f32.mrb[0].mxu0
  %619 = vmatprep.mubr.bf16.mxu0 %v241
  %620 = vmatmul.mubr.bf16.gmra.mrb[0].mxu0 %v189
  %v621 = vpop.f32.mrb[0].mxu0
  %v622 = vadd.f32 %v557, %v621
  %v623 = vpop.f32.mrb[0].mxu0
  %v624 = vpop.f32.mrb[0].mxu0
  %v625 = vadd.f32 %v560, %v624
  %v626 = vpop.f32.mrb[0].mxu0
  %627 = vdwg.mxu0
  %v628 = vld [vmem:[%s2] sm:$0xff]
  %v629 = vadd.f32 %v598, %v628
  %v630 = vadd.f32 %v601, %v628
  %v631 = vadd.f32 %v606, %v628
  %v632 = vadd.f32 %v609, %v628
  %v633 = vadd.f32 %v614, %v628
  %v634 = vadd.f32 %v617, %v628
  %v635 = vadd.f32 %v622, %v628
  %v636 = vadd.f32 %v625, %v628
  %v637 = vrot.slane %v629, 4
  %v638 = vmax.f32 %v629, %v637
  %v639 = vrot.slane %v638, 2
  %v640 = vmax.f32 %v638, %v639
  %v641 = vrot.slane %v640, 1
  %v642 = vmax.f32 %v640, %v641
  %v643 = vrot.slane %v630, 4
  %v644 = vmax.f32 %v630, %v643
  %v645 = vrot.slane %v644, 2
  %v646 = vmax.f32 %v644, %v645
  %v647 = vrot.slane %v646, 1
  %v648 = vmax.f32 %v646, %v647
  %v649 = vrot.slane %v631, 4
  %v650 = vmax.f32 %v631, %v649
  %v651 = vrot.slane %v650, 2
  %v652 = vmax.f32 %v650, %v651
  %v653 = vrot.slane %v652, 1
  %v654 = vmax.f32 %v652, %v653
  %v655 = vrot.slane %v632, 4
  %v656 = vmax.f32 %v632, %v655
  %v657 = vrot.slane %v656, 2
  %v658 = vmax.f32 %v656, %v657
  %v659 = vrot.slane %v658, 1
  %v660 = vmax.f32 %v658, %v659
  %v661 = vrot.slane %v633, 4
  %v662 = vmax.f32 %v633, %v661
  %v663 = vrot.slane %v662, 2
  %v664 = vmax.f32 %v662, %v663
  %v665 = vrot.slane %v664, 1
  %v666 = vmax.f32 %v664, %v665
  %v667 = vrot.slane %v634, 4
  %v668 = vmax.f32 %v634, %v667
  %v669 = vrot.slane %v668, 2
  %v670 = vmax.f32 %v668, %v669
  %v671 = vrot.slane %v670, 1
  %v672 = vmax.f32 %v670, %v671
  %v673 = vrot.slane %v635, 4
  %v674 = vmax.f32 %v635, %v673
  %v675 = vrot.slane %v674, 2
  %v676 = vmax.f32 %v674, %v675
  %v677 = vrot.slane %v676, 1
  %v678 = vmax.f32 %v676, %v677
  %v679 = vrot.slane %v636, 4
  %v680 = vmax.f32 %v636, %v679
  %v681 = vrot.slane %v680, 2
  %v682 = vmax.f32 %v680, %v681
  %v683 = vrot.slane %v682, 1
  %v684 = vmax.f32 %v682, %v683
  %v685 = vld [vmem:[%s3] sm:$0x1]
  %v687 = vlaneseq
  %v688 = vshrl.u32 %v687, 7
  %v689 = vsub.s32 0, %v688
  %v690 = vrot.slane %v685, %v689
  %v692 = vadd.f32 %v642, %v690
  %v693 = vadd.f32 %v648, %v690
  %v694 = vadd.f32 %v654, %v690
  %v695 = vadd.f32 %v660, %v690
  %v696 = vadd.f32 %v666, %v690
  %v697 = vadd.f32 %v672, %v690
  %v698 = vadd.f32 %v678, %v690
  %v699 = vadd.f32 %v684, %v690
  %v700 = vmax.f32 %v692, 0.0
  %v701 = vmax.f32 %v693, 0.0
  %v702 = vmax.f32 %v694, 0.0
  %v703 = vmax.f32 %v695, 0.0
  %v704 = vmax.f32 %v696, 0.0
  %v705 = vmax.f32 %v697, 0.0
  %v706 = vmax.f32 %v698, 0.0
  %v707 = vmax.f32 %v699, 0.0
  %v708 = vpack.c.bf16 %v700, %v700
  %v709 = vpack.c.bf16 %v701, %v701
  %v710 = vpack.c.bf16 %v702, %v702
  %v711 = vpack.c.bf16 %v703, %v703
  %v712 = vpack.c.bf16 %v704, %v704
  %v713 = vpack.c.bf16 %v705, %v705
  %v714 = vpack.c.bf16 %v706, %v706
  %v715 = vpack.c.bf16 %v707, %v707
  %v716 = vld [vmem:[%s4] sm:$0xf]
  %v717 = vld [vmem:[%s4 + $0x4] sm:$0xf]
  %v718 = vld [vmem:[%s4 + $0x8] sm:$0xf]
  %v719 = vld [vmem:[%s4 + $0xc] sm:$0xf]
  %v720 = vld [vmem:[%s4 + $0x10] sm:$0xf]
  %v721 = vld [vmem:[%s4 + $0x14] sm:$0xf]
  %v722 = vld [vmem:[%s4 + $0x18] sm:$0xf]
  %v723 = vld [vmem:[%s4 + $0x1c] sm:$0xf]
  %v724 = vld [vmem:[%s4 + $0x20] sm:$0xf]
  %v725 = vld [vmem:[%s4 + $0x24] sm:$0xf]
  %v726 = vld [vmem:[%s4 + $0x28] sm:$0xf]
  %v727 = vld [vmem:[%s4 + $0x2c] sm:$0xf]
  %v728 = vld [vmem:[%s4 + $0x30] sm:$0xf]
  %v729 = vld [vmem:[%s4 + $0x34] sm:$0xf]
  %v730 = vld [vmem:[%s4 + $0x38] sm:$0xf]
  %v731 = vld [vmem:[%s4 + $0x3c] sm:$0xf]
  %v732 = vld [vmem:[%s5] sm:$0x1]
  %v734 = vlaneseq
  %v735 = vshrl.u32 %v734, 7
  %v736 = vsub.s32 0, %v735
  %v737 = vrot.slane %v732, %v736
  %v747 = vunpack.c.l.b16 %v708
  %v748 = vunpack.c.l.b16 %v709
  %v749 = vunpack.c.l.b16 %v710
  %v750 = vunpack.c.l.b16 %v711
  %v751 = vunpack.c.l.b16 %v712
  %v752 = vunpack.c.l.b16 %v713
  %v753 = vunpack.c.l.b16 %v714
  %v754 = vunpack.c.l.b16 %v715
  %v755 = vrot.slane %v748, 7
  %vm756 = vcmask 1041409
  %v757 = vsel %vm756, %v755, %v747
  %v758 = vrot.slane %v749, 6
  %vm759 = vcmask 1042434
  %v760 = vsel %vm759, %v758, %v757
  %v761 = vrot.slane %v750, 5
  %vm762 = vcmask 1043459
  %v763 = vsel %vm762, %v761, %v760
  %v764 = vrot.slane %v751, 4
  %vm765 = vcmask 1044484
  %v766 = vsel %vm765, %v764, %v763
  %v767 = vrot.slane %v752, 3
  %vm768 = vcmask 1045509
  %v769 = vsel %vm768, %v767, %v766
  %v770 = vrot.slane %v753, 2
  %vm771 = vcmask 1046534
  %v772 = vsel %vm771, %v770, %v769
  %v773 = vrot.slane %v754, 1
  %vm774 = vcmask 1047559
  %v775 = vsel %vm774, %v773, %v772
  %v776 = vpack.c.b16 %v775, %v775
  %v794 = vunpack.c.l.b16 %v716
  %v795 = vunpack.c.l.b16 %v717
  %v796 = vunpack.c.l.b16 %v718
  %v797 = vunpack.c.l.b16 %v719
  %v798 = vunpack.c.l.b16 %v720
  %v799 = vunpack.c.l.b16 %v721
  %v800 = vunpack.c.l.b16 %v722
  %v801 = vunpack.c.l.b16 %v723
  %v802 = vunpack.c.l.b16 %v724
  %v803 = vunpack.c.l.b16 %v725
  %v804 = vunpack.c.l.b16 %v726
  %v805 = vunpack.c.l.b16 %v727
  %v806 = vunpack.c.l.b16 %v728
  %v807 = vunpack.c.l.b16 %v729
  %v808 = vunpack.c.l.b16 %v730
  %v809 = vunpack.c.l.b16 %v731
  %v810 = vpack.c.b16 %v795, %v794
  %v811 = vpack.c.b16 %v797, %v796
  %v812 = vpack.c.b16 %v799, %v798
  %v813 = vpack.c.b16 %v801, %v800
  %v814 = vpack.c.b16 %v803, %v802
  %v815 = vpack.c.b16 %v805, %v804
  %v816 = vpack.c.b16 %v807, %v806
  %v817 = vpack.c.b16 %v809, %v808
  %826 = vmatprep.subr.bf16.mxu0 0
  %827 = vmatpush1.bf16.msra.mxu0 %v810
  %828 = vmatprep.subr.bf16.mxu0 0
  %829 = vmatpush1.bf16.msra.mxu0 %v811
  %830 = vmatprep.subr.bf16.mxu0 0
  %831 = vmatpush1.bf16.msra.mxu0 %v812
  %832 = vmatprep.subr.bf16.mxu0 0
  %833 = vmatpush1.bf16.msra.mxu0 %v813
  %834 = vmatprep.subr.bf16.mxu0 0
  %835 = vmatpush1.bf16.msra.mxu0 %v814
  %836 = vmatprep.subr.bf16.mxu0 0
  %837 = vmatpush1.bf16.msra.mxu0 %v815
  %838 = vmatprep.subr.bf16.mxu0 0
  %839 = vmatpush1.bf16.msra.mxu0 %v816
  %840 = vmatprep.subr.bf16.mxu0 0
  %841 = vmatpush1.bf16.msra.mxu0 %v817
  %842 = vmatprep.subr.bf16.mxu0 0
  %843 = vmatpush1.bf16.msra.mxu0 0
  %844 = vmatprep.subr.bf16.mxu0 0
  %845 = vmatpush1.bf16.msra.mxu0 0
  %846 = vmatprep.subr.bf16.mxu0 0
  %847 = vmatpush1.bf16.msra.mxu0 0
  %848 = vmatprep.subr.bf16.mxu0 0
  %849 = vmatpush1.bf16.msra.mxu0 0
  %850 = vmatprep.subr.bf16.mxu0 0
  %851 = vmatpush1.bf16.msra.mxu0 0
  %852 = vmatprep.subr.bf16.mxu0 0
  %853 = vmatpush1.bf16.msra.mxu0 0
  %854 = vmatprep.subr.bf16.mxu0 0
  %855 = vmatpush1.bf16.msra.mxu0 0
  %856 = vmatprep.subr.bf16.mxu0 0
  %857 = vmatpush1.bf16.msra.mxu0 0
  %858 = vmatprep.mubr.bf16.mxu0 0
  %859 = vmatmul.mubr.bf16.gmra.mrb[0].mxu0 %v776
  %v860 = vpop.f32.mrb[0].mxu0
  %v861 = vadd.f32 %v737, %v860
  %v862 = vpop.f32.mrb[0].mxu0
  %v863 = vpop.f32.mrb[0].mxu0
  %v864 = vpop.f32.mrb[0].mxu0
  %865 = vdwg.mxu0
  %866 = vst [vmem:[%s6] sm:$0xff] %v861
  // Predicated region
  $region26: #{siamese_forward.1} parent=0 // pred_check
    _
  $region27: #{siamese_forward.1} parent=0 // pred_check_branch
    %868 = sbr.rel (0) target = $region29
  $region28: #{siamese_forward.1} parent=0 // pred_region
    _
  $region29: #{siamese_forward.1} parent=0 // pred_fallthru
    _
  // Predicated region
  $region30: #{siamese_forward.1} parent=0 // pred_check
    _
  $region31: #{siamese_forward.1} parent=0 // pred_check_branch
    %870 = sbr.rel (0) target = $region33
  $region32: #{siamese_forward.1} parent=0 // pred_region
    _
  $region33: #{siamese_forward.1} parent=0 // pred_fallthru
    _

</llo_original>
